<compile_context>
chip_gen: v7x
topology: tpu7x:2x2x1
jax: 0.10.0
libtpu: 0.0.40
codegen_flags: <defaults>
</compile_context>

<pallas_src>
import functools

import jax
import jax.numpy as jnp
from jax.experimental import pallas as pl
from jax.experimental.pallas import tpu as pltpu


def _fused_mlp_kernel(*refs, n_layers: int, final_act: str):
    """Fused MLP: refs = (x_ref, w0, b0, w1, b1, ..., o_ref).

    All refs are VMEM tiles.  Intermediate activations never leave vregs.
    """
    x_ref = refs[0]
    o_ref = refs[-1]
    param_refs = refs[1:-1]

    x = x_ref[...]
    for i in range(n_layers):
        w = param_refs[2 * i][...]
        b = param_refs[2 * i + 1][...]
        y = jnp.dot(x, w, preferred_element_type=jnp.float32) + b
        if i < n_layers - 1:
            x = jnp.maximum(y, 0.0)                       # hidden: ReLU (VPU)
        elif final_act == "sigmoid":
            # sigmoid = 1 / (1 + exp(-y)); exp + approx recip both go to the
            # otherwise-idle EUP slot.
            x = pl.reciprocal(1.0 + jnp.exp(-y), approx=True)
        else:                                             # final_act == "none"
            x = y
    o_ref[...] = x.astype(o_ref.dtype)


def _pick_batch_tile(batch: int):
    """Batch tile for the gridded path, or None for the single-block path.

    Prefer the biggest tile (fewer grid steps, less per-step overhead) that
    still yields >= 2 grid points; otherwise (large, non-divisible batch)
    fall back to 256-row tiles with wrapper-side padding.
    """
    if batch < 256:
        return None                       # small batch: single-block path
    for tb in (512, 256, 128):
        if batch % tb == 0 and batch // tb >= 2:
            return tb
    return 256                            # non-divisible: pad in the wrapper


def _cost_estimate(batch, layer_shapes, final_act):
    dims = list(zip(layer_shapes[:-1], layer_shapes[1:]))
    flops = 2 * batch * sum(i * o for i, o in dims)
    transcendentals = batch * layer_shapes[-1] if final_act == "sigmoid" else 0
    bytes_accessed = 4 * (
        batch * layer_shapes[0]
        + batch * layer_shapes[-1]
        + sum(i * o + o for i, o in dims)
    )
    return pl.CostEstimate(
        flops=flops,
        transcendentals=transcendentals,
        bytes_accessed=bytes_accessed,
    )


def net_forward(x, params, layer_shapes):
    """Pallas equivalent of Net.forward -- a single fused pallas_call."""
    B, In = x.shape
    Out = layer_shapes[-1]
    n_layers = len(params)
    final_act = "none" if layer_shapes[-1] > 1 else "sigmoid"

    kernel = functools.partial(
        _fused_mlp_kernel, n_layers=n_layers, final_act=final_act
    )
    flat_params = [a for wb in params for a in wb]
    cost = _cost_estimate(B, layer_shapes, final_act)

    tb = _pick_batch_tile(B)

    if tb is None:
        # Small batch: no grid, no pipelining machinery, no double-buffering.
        # Every operand is a full-array block resident in VMEM.
        vmem = pl.BlockSpec(memory_space=pltpu.MemorySpace.VMEM)
        return pl.pallas_call(
            kernel,
            out_shape=jax.ShapeDtypeStruct((B, Out), x.dtype),
            in_specs=[vmem] * (1 + len(flat_params)),
            out_specs=vmem,
            cost_estimate=cost,
        )(x, *flat_params)

    # Large batch: tile the batch dimension; weights/biases broadcast to every
    # grid point (constant index_map) and stay resident in VMEM.  Batch tiles
    # are independent -> "parallel" lets v7x shard the grid across its 2 TCs.
    pad = (-B) % tb
    xg = jnp.pad(x, ((0, pad), (0, 0))) if pad else x
    Bg = B + pad

    in_specs = [pl.BlockSpec((tb, In), lambda i: (i, 0))]
    for w, b in params:
        in_specs.append(pl.BlockSpec(w.shape, lambda i: (0, 0)))
        in_specs.append(pl.BlockSpec(b.shape, lambda i: (0, 0)))
    out_specs = pl.BlockSpec((tb, Out), lambda i: (i, 0))

    out = pl.pallas_call(
        kernel,
        out_shape=jax.ShapeDtypeStruct((Bg, Out), x.dtype),
        grid=(Bg // tb,),
        in_specs=in_specs,
        out_specs=out_specs,
        compiler_params=pltpu.CompilerParams(
            dimension_semantics=("parallel",)
        ),
        cost_estimate=cost,
    )(xg, *flat_params)
    return out[:B] if pad else out


def init_params(layer_shapes, key):
    """Deterministic init matching nn.Linear shapes.

    PyTorch: weight (out, in), bias (out,), both U(-1/sqrt(in), 1/sqrt(in)).
    We store the weight already transposed to (in, out) for the kernel and the
    bias as (1, out) so everything is a 2-D VMEM tile.
    """
    params = []
    for i in range(len(layer_shapes) - 1):
        fan_in, fan_out = layer_shapes[i], layer_shapes[i + 1]
        key, kw, kb = jax.random.split(key, 3)
        bound = 1.0 / jnp.sqrt(jnp.float32(fan_in))
        w = jax.random.uniform(
            kw, (fan_in, fan_out), jnp.float32, minval=-bound, maxval=bound
        )
        b = jax.random.uniform(
            kb, (1, fan_out), jnp.float32, minval=-bound, maxval=bound
        )
        params.append((w, b))
    return params


def _reference_forward(x, params, layer_shapes):
    """Pure-JAX reference of the same forward pass."""
    y = x
    for i, (w, b) in enumerate(params):
        y = y @ w + b
        if i < len(params) - 1:
            y = jnp.maximum(y, 0.0)
        elif layer_shapes[-1] <= 1:
            y = jax.nn.sigmoid(y)
    return y


if __name__ == "__main__":
    key = jax.random.PRNGKey(0)

    # Case 1: small batch, scalar output head -> sigmoid branch,
    #         single-block (no-grid) fused path.
    layer_shapes_a = [32, 64, 32, 1]
    batch_a = 8
    key, kx_a, kp_a = jax.random.split(key, 3)
    x_a = jax.random.normal(kx_a, (batch_a, layer_shapes_a[0]), jnp.float32)
    params_a = init_params(layer_shapes_a, kp_a)

    out_a = jax.block_until_ready(net_forward(x_a, params_a, layer_shapes_a))
    ref_a = _reference_forward(x_a, params_a, layer_shapes_a)
    assert out_a.shape == (batch_a, layer_shapes_a[-1])
    assert jnp.allclose(out_a, ref_a, atol=2e-3, rtol=2e-3)

    # Case 2: larger batch, multi-dim output head -> linear final layer,
    #         batch-tiled ("parallel") grid path.
    layer_shapes_b = [32, 64, 32, 4]
    batch_b = 512
    key, kx_b, kp_b = jax.random.split(key, 3)
    x_b = jax.random.normal(kx_b, (batch_b, layer_shapes_b[0]), jnp.float32)
    params_b = init_params(layer_shapes_b, kp_b)

    out_b = jax.block_until_ready(net_forward(x_b, params_b, layer_shapes_b))
    ref_b = _reference_forward(x_b, params_b, layer_shapes_b)
    assert out_b.shape == (batch_b, layer_shapes_b[-1])
    assert jnp.allclose(out_b, ref_b, atol=2e-3, rtol=2e-3)

    # Case 3: large batch that does NOT divide a tile -> padded grid path.
    layer_shapes_c = [32, 64, 32, 1]
    batch_c = 300
    key, kx_c, kp_c = jax.random.split(key, 3)
    x_c = jax.random.normal(kx_c, (batch_c, layer_shapes_c[0]), jnp.float32)
    params_c = init_params(layer_shapes_c, kp_c)

    out_c = jax.block_until_ready(net_forward(x_c, params_c, layer_shapes_c))
    ref_c = _reference_forward(x_c, params_c, layer_shapes_c)
    assert out_c.shape == (batch_c, layer_shapes_c[-1])
    assert jnp.allclose(out_c, ref_c, atol=2e-3, rtol=2e-3)

    print("KERNEL_OK")
</pallas_src>

<mosaic_0001>
module attributes {stable_mosaic.version = 11 : i64} {
  func.func @_fused_mlp_kernel(%arg0: memref<8x32xf32, #tpu.memory_space<vmem>>, %arg1: memref<32x64xf32, #tpu.memory_space<vmem>>, %arg2: memref<1x64xf32, #tpu.memory_space<vmem>>, %arg3: memref<64x32xf32, #tpu.memory_space<vmem>>, %arg4: memref<1x32xf32, #tpu.memory_space<vmem>>, %arg5: memref<32x1xf32, #tpu.memory_space<vmem>>, %arg6: memref<1x1xf32, #tpu.memory_space<vmem>>, %arg7: memref<8x1xf32, #tpu.memory_space<vmem>>) attributes {dimension_semantics = [], scalar_prefetch = 0 : i64, scratch_operands = 0 : i64, tpu.core_type = #tpu.core_type<tc>} {
    %c0 = arith.constant 0 : index
    %c0_0 = arith.constant 0 : index
    %0 = vector.load %arg0[%c0, %c0_0] : memref<8x32xf32, #tpu.memory_space<vmem>>, vector<8x32xf32>
    %c0_1 = arith.constant 0 : index
    %c0_2 = arith.constant 0 : index
    %1 = vector.load %arg1[%c0_1, %c0_2] : memref<32x64xf32, #tpu.memory_space<vmem>>, vector<32x64xf32>
    %c0_3 = arith.constant 0 : index
    %c0_4 = arith.constant 0 : index
    %2 = vector.load %arg2[%c0_3, %c0_4] : memref<1x64xf32, #tpu.memory_space<vmem>>, vector<1x64xf32>
    %cst = arith.constant dense<0.000000e+00> : vector<8x64xf32>
    %3 = tpu.matmul %0, %1, %cst {dimension_numbers = #tpu.dot_dimension_numbers<[1], [0], [0], [1], [0, 0, 1, 1], [], []>} : vector<8x32xf32>, vector<32x64xf32>, vector<8x64xf32> -> vector<8x64xf32>
    %4 = vector.broadcast %2 : vector<1x64xf32> to vector<8x64xf32>
    %5 = arith.addf %3, %4 : vector<8x64xf32>
    %cst_5 = arith.constant 0.000000e+00 : f32
    %6 = vector.broadcast %cst_5 : f32 to vector<8x64xf32>
    %7 = arith.maximumf %5, %6 : vector<8x64xf32>
    %c0_6 = arith.constant 0 : index
    %c0_7 = arith.constant 0 : index
    %8 = vector.load %arg3[%c0_6, %c0_7] : memref<64x32xf32, #tpu.memory_space<vmem>>, vector<64x32xf32>
    %c0_8 = arith.constant 0 : index
    %c0_9 = arith.constant 0 : index
    %9 = vector.load %arg4[%c0_8, %c0_9] : memref<1x32xf32, #tpu.memory_space<vmem>>, vector<1x32xf32>
    %cst_10 = arith.constant dense<0.000000e+00> : vector<8x32xf32>
    %10 = tpu.matmul %7, %8, %cst_10 {dimension_numbers = #tpu.dot_dimension_numbers<[1], [0], [0], [1], [0, 0, 1, 1], [], []>} : vector<8x64xf32>, vector<64x32xf32>, vector<8x32xf32> -> vector<8x32xf32>
    %11 = vector.broadcast %9 : vector<1x32xf32> to vector<8x32xf32>
    %12 = arith.addf %10, %11 : vector<8x32xf32>
    %cst_11 = arith.constant 0.000000e+00 : f32
    %13 = vector.broadcast %cst_11 : f32 to vector<8x32xf32>
    %14 = arith.maximumf %12, %13 : vector<8x32xf32>
    %c0_12 = arith.constant 0 : index
    %c0_13 = arith.constant 0 : index
    %15 = vector.load %arg5[%c0_12, %c0_13] : memref<32x1xf32, #tpu.memory_space<vmem>>, vector<32x1xf32>
    %c0_14 = arith.constant 0 : index
    %c0_15 = arith.constant 0 : index
    %16 = vector.load %arg6[%c0_14, %c0_15] : memref<1x1xf32, #tpu.memory_space<vmem>>, vector<1x1xf32>
    %cst_16 = arith.constant dense<0.000000e+00> : vector<8x1xf32>
    %17 = tpu.matmul %14, %15, %cst_16 {dimension_numbers = #tpu.dot_dimension_numbers<[1], [0], [0], [1], [0, 0, 1, 1], [], []>} : vector<8x32xf32>, vector<32x1xf32>, vector<8x1xf32> -> vector<8x1xf32>
    %18 = vector.broadcast %16 : vector<1x1xf32> to vector<8x1xf32>
    %19 = arith.addf %17, %18 : vector<8x1xf32>
    %cst_17 = arith.constant 0.000000e+00 : f32
    %20 = vector.broadcast %cst_17 : f32 to vector<8x1xf32>
    %21 = arith.subf %20, %19 : vector<8x1xf32>
    %22 = math.exp %21 : vector<8x1xf32>
    %cst_18 = arith.constant 1.000000e+00 : f32
    %23 = vector.broadcast %cst_18 : f32 to vector<8x1xf32>
    %24 = arith.addf %23, %22 : vector<8x1xf32>
    %25 = tpu.reciprocal %24 {approx = true} : vector<8x1xf32> -> vector<8x1xf32>
    %c0_19 = arith.constant 0 : index
    %c0_20 = arith.constant 0 : index
    %26 = vector.load %arg7[%c0_19, %c0_20] : memref<8x1xf32, #tpu.memory_space<vmem>>, vector<8x1xf32>
    tpu.vector_store %arg7[%c0_19, %c0_20], %25 {strides = array<i32>} : memref<8x1xf32, #tpu.memory_space<vmem>>, vector<8x1xf32>,
    return
  }
}

</mosaic_0001>

<llo_original>
// kernel: tpu_custom_call.1
$region0: #{tpu_custom_call.1}
  #allocation0 [shape = 'u32[]', space=smem, size = 0x4, offset = 0x4, fixed_abs, tag = 'smem constant byte address 0x4 - core index']
  #allocation1 [shape = 'u32[144,128]{1,0:T(1,128)}', space=vmem, size = 0x12000, scoped, tag = 'internal scratch']
  #allocation2 [shape = 'f32[1,1]{1,0:T(1,128)S(1)}', space=vmem, size = 0x200, scoped, tag = 'scoped memory for tpu_custom_call.1']
  %s0 = inlined_call_operand.vmem [shape: f32[8,32], index: 0, kind: input, shape index: {}]
  %s1 = inlined_call_operand.vmem [shape: f32[32,64], index: 1, kind: input, shape index: {}]
  %s2 = inlined_call_operand.vmem [shape: f32[1,64], index: 2, kind: input, shape index: {}]
  %s3 = inlined_call_operand.vmem [shape: f32[64,32], index: 3, kind: input, shape index: {}]
  %s4 = inlined_call_operand.vmem [shape: f32[1,32], index: 4, kind: input, shape index: {}]
  %s5 = inlined_call_operand.vmem [shape: f32[32,1], index: 5, kind: input, shape index: {}]
  %s6 = inlined_call_operand.<no memory space> [shape: f32[1,1], index: 6, kind: input, shape index: {}]
  %s7 = inlined_call_operand.vmem [shape: f32[8,1], index: 7, kind: output, shape index: {}]
  %s8 = sld [smem:[#allocation0]]
  $region38: #{tpu_custom_call.1} parent=0
    _
  %s10 = ssub.s32 1, %s8
  %s11 = scalar_select 0, %s10, %s8
  %v12 = vstv %s6
  %13 = vst [vmem:[#allocation2] sm:$0x1] %v12
  // Predicated region
  $region2: #{tpu_custom_call.1} parent=0 // pred_check
    _
  $region3: #{tpu_custom_call.1} parent=0 // pred_check_branch
    %15 = sbr.rel (0) target = $region5
  $region4: #{tpu_custom_call.1} parent=0 // pred_region
    _
  $region5: #{tpu_custom_call.1} parent=0 // pred_fallthru
    _
  // Predicated region
  $region6: #{tpu_custom_call.1} parent=0 // pred_check
    _
  $region7: #{tpu_custom_call.1} parent=0 // pred_check_branch
    %17 = sbr.rel (0) target = $region9
  $region8: #{tpu_custom_call.1} parent=0 // pred_region
    _
  $region9: #{tpu_custom_call.1} parent=0 // pred_fallthru
    _
  // Predicated region
  $region10: #{tpu_custom_call.1} parent=0 // pred_check
    _
  $region11: #{tpu_custom_call.1} parent=0 // pred_check_branch
    %19 = sbr.rel (0) target = $region13
  $region12: #{tpu_custom_call.1} parent=0 // pred_region
    _
  $region13: #{tpu_custom_call.1} parent=0 // pred_fallthru
    _
  // Predicated region
  $region14: #{tpu_custom_call.1} parent=0 // pred_check
    _
  $region15: #{tpu_custom_call.1} parent=0 // pred_check_branch
    %21 = sbr.rel (0) target = $region17
  $region16: #{tpu_custom_call.1} parent=0 // pred_region
    _
  $region17: #{tpu_custom_call.1} parent=0 // pred_fallthru
    _
  // Predicated region
  $region18: #{tpu_custom_call.1} parent=0 // pred_check
    _
  $region19: #{tpu_custom_call.1} parent=0 // pred_check_branch
    %23 = sbr.rel (0) target = $region21
  $region20: #{tpu_custom_call.1} parent=0 // pred_region
    _
  $region21: #{tpu_custom_call.1} parent=0 // pred_fallthru
    _
  // Predicated region
  $region22: #{tpu_custom_call.1} parent=0 // pred_check
    _
  $region23: #{tpu_custom_call.1} parent=0 // pred_check_branch
    %25 = sbr.rel (0) target = $region25
  $region24: #{tpu_custom_call.1} parent=0 // pred_region
    _
  $region25: #{tpu_custom_call.1} parent=0 // pred_fallthru
    _
  // Predicated region
  $region26: #{tpu_custom_call.1} parent=0 // pred_check
    _
  $region27: #{tpu_custom_call.1} parent=0 // pred_check_branch
    %27 = sbr.rel (0) target = $region29
  $region28: #{tpu_custom_call.1} parent=0 // pred_region
    _
  $region29: #{tpu_custom_call.1} parent=0 // pred_fallthru
    _
  %v28 = vld [vmem:[%s0] sm:$0xff]
  %v29 = vld [vmem:[%s1] sm:$0xff]
  %v30 = vld [vmem:[%s1 + $0x8] sm:$0xff]
  %v31 = vld [vmem:[%s1 + $0x10] sm:$0xff]
  %v32 = vld [vmem:[%s1 + $0x18] sm:$0xff]
  %v33 = vld [vmem:[%s2] sm:$0x1]
  %v35 = vlaneseq
  %v36 = vshrl.u32 %v35, 7
  %v37 = vsub.s32 0, %v36
  %v38 = vrot.slane %v33, %v37
  %vm40 = vcmask 261120
  %v42 = vsel %vm40, %v28, 0
  %44 = vmatprep.subr.mxu0 0.0
  %45 = vmatpush1.msra.mxu0 %v29
  %46 = vmatprep.subr.mxu0 0.0
  %47 = vmatpush1.msra.mxu0 %v30
  %48 = vmatprep.subr.mxu0 0.0
  %49 = vmatpush1.msra.mxu0 %v31
  %50 = vmatprep.subr.mxu0 0.0
  %51 = vmatpush1.msra.mxu0 %v32
  %52 = vmatprep.subr.mxu0 0.0
  %53 = vmatpush1.msra.mxu0 0.0
  %54 = vmatprep.subr.mxu0 0.0
  %55 = vmatpush1.msra.mxu0 0.0
  %56 = vmatprep.subr.mxu0 0.0
  %57 = vmatpush1.msra.mxu0 0.0
  %58 = vmatprep.subr.mxu0 0.0
  %59 = vmatpush1.msra.mxu0 0.0
  %60 = vmatprep.subr.mxu0 0.0
  %61 = vmatpush1.msra.mxu0 0.0
  %62 = vmatprep.subr.mxu0 0.0
  %63 = vmatpush1.msra.mxu0 0.0
  %64 = vmatprep.subr.mxu0 0.0
  %65 = vmatpush1.msra.mxu0 0.0
  %66 = vmatprep.subr.mxu0 0.0
  %67 = vmatpush1.msra.mxu0 0.0
  %68 = vmatprep.subr.mxu0 0.0
  %69 = vmatpush1.msra.mxu0 0.0
  %70 = vmatprep.subr.mxu0 0.0
  %71 = vmatpush1.msra.mxu0 0.0
  %72 = vmatprep.subr.mxu0 0.0
  %73 = vmatpush1.msra.mxu0 0.0
  %74 = vmatprep.subr.mxu0 0.0
  %75 = vmatpush1.msra.mxu0 0.0
  %76 = vmatprep.subr.mxu0 0.0
  %77 = vmatpush1.msra.mxu0 0.0
  %78 = vmatprep.subr.mxu0 0.0
  %79 = vmatpush1.msra.mxu0 0.0
  %80 = vmatprep.subr.mxu0 0.0
  %81 = vmatpush1.msra.mxu0 0.0
  %82 = vmatprep.subr.mxu0 0.0
  %83 = vmatpush1.msra.mxu0 0.0
  %84 = vmatprep.subr.mxu0 0.0
  %85 = vmatpush1.msra.mxu0 0.0
  %86 = vmatprep.subr.mxu0 0.0
  %87 = vmatpush1.msra.mxu0 0.0
  %88 = vmatprep.subr.mxu0 0.0
  %89 = vmatpush1.msra.mxu0 0.0
  %90 = vmatprep.subr.mxu0 0.0
  %91 = vmatpush1.msra.mxu0 0.0
  %92 = vmatprep.subr.mxu0 0.0
  %93 = vmatpush1.msra.mxu0 0.0
  %94 = vmatprep.subr.mxu0 0.0
  %95 = vmatpush1.msra.mxu0 0.0
  %96 = vmatprep.subr.mxu0 0.0
  %97 = vmatpush1.msra.mxu0 0.0
  %98 = vmatprep.subr.mxu0 0.0
  %99 = vmatpush1.msra.mxu0 0.0
  %100 = vmatprep.subr.mxu0 0.0
  %101 = vmatpush1.msra.mxu0 0.0
  %102 = vmatprep.subr.mxu0 0.0
  %103 = vmatpush1.msra.mxu0 0.0
  %104 = vmatprep.subr.mxu0 0.0
  %105 = vmatpush1.msra.mxu0 0.0
  %106 = vmatprep.subr.mxu0 0.0
  %107 = vmatpush1.msra.mxu0 0.0
  %108 = vmatprep.mubr.f32.mxu0 0.0
  %109 = vmatmul.mubr.f32.gmra.mrb[0].mxu0 %v42
  %v110 = vpop.f32.mrb[0].mxu0
  %v111 = vadd.f32 %v38, %v110
  %v112 = vpop.f32.mrb[0].mxu0
  %113 = vdwg.mxu0
  %v114 = vmax.f32 %v111, 0.0
  %v115 = vld [vmem:[%s3] sm:$0xff]
  %v116 = vld [vmem:[%s3 + $0x8] sm:$0xff]
  %v117 = vld [vmem:[%s3 + $0x10] sm:$0xff]
  %v118 = vld [vmem:[%s3 + $0x18] sm:$0xff]
  %v119 = vld [vmem:[%s3 + $0x20] sm:$0xff]
  %v120 = vld [vmem:[%s3 + $0x28] sm:$0xff]
  %v121 = vld [vmem:[%s3 + $0x30] sm:$0xff]
  %v122 = vld [vmem:[%s3 + $0x38] sm:$0xff]
  %v123 = vld [vmem:[%s4] sm:$0x1]
  %v125 = vlaneseq
  %v126 = vshrl.u32 %v125, 7
  %v127 = vsub.s32 0, %v126
  %v128 = vrot.slane %v123, %v127
  %vm130 = vcmask 523264
  %v132 = vsel %vm130, %v114, 0
  %134 = vmatprep.subr.mxu0 0.0
  %135 = vmatpush1.msra.mxu0 %v115
  %136 = vmatprep.subr.mxu0 0.0
  %137 = vmatpush1.msra.mxu0 %v116
  %138 = vmatprep.subr.mxu0 0.0
  %139 = vmatpush1.msra.mxu0 %v117
  %140 = vmatprep.subr.mxu0 0.0
  %141 = vmatpush1.msra.mxu0 %v118
  %142 = vmatprep.subr.mxu0 0.0
  %143 = vmatpush1.msra.mxu0 %v119
  %144 = vmatprep.subr.mxu0 0.0
  %145 = vmatpush1.msra.mxu0 %v120
  %146 = vmatprep.subr.mxu0 0.0
  %147 = vmatpush1.msra.mxu0 %v121
  %148 = vmatprep.subr.mxu0 0.0
  %149 = vmatpush1.msra.mxu0 %v122
  %150 = vmatprep.subr.mxu0 0.0
  %151 = vmatpush1.msra.mxu0 0.0
  %152 = vmatprep.subr.mxu0 0.0
  %153 = vmatpush1.msra.mxu0 0.0
  %154 = vmatprep.subr.mxu0 0.0
  %155 = vmatpush1.msra.mxu0 0.0
  %156 = vmatprep.subr.mxu0 0.0
  %157 = vmatpush1.msra.mxu0 0.0
  %158 = vmatprep.subr.mxu0 0.0
  %159 = vmatpush1.msra.mxu0 0.0
  %160 = vmatprep.subr.mxu0 0.0
  %161 = vmatpush1.msra.mxu0 0.0
  %162 = vmatprep.subr.mxu0 0.0
  %163 = vmatpush1.msra.mxu0 0.0
  %164 = vmatprep.subr.mxu0 0.0
  %165 = vmatpush1.msra.mxu0 0.0
  %166 = vmatprep.subr.mxu0 0.0
  %167 = vmatpush1.msra.mxu0 0.0
  %168 = vmatprep.subr.mxu0 0.0
  %169 = vmatpush1.msra.mxu0 0.0
  %170 = vmatprep.subr.mxu0 0.0
  %171 = vmatpush1.msra.mxu0 0.0
  %172 = vmatprep.subr.mxu0 0.0
  %173 = vmatpush1.msra.mxu0 0.0
  %174 = vmatprep.subr.mxu0 0.0
  %175 = vmatpush1.msra.mxu0 0.0
  %176 = vmatprep.subr.mxu0 0.0
  %177 = vmatpush1.msra.mxu0 0.0
  %178 = vmatprep.subr.mxu0 0.0
  %179 = vmatpush1.msra.mxu0 0.0
  %180 = vmatprep.subr.mxu0 0.0
  %181 = vmatpush1.msra.mxu0 0.0
  %182 = vmatprep.subr.mxu0 0.0
  %183 = vmatpush1.msra.mxu0 0.0
  %184 = vmatprep.subr.mxu0 0.0
  %185 = vmatpush1.msra.mxu0 0.0
  %186 = vmatprep.subr.mxu0 0.0
  %187 = vmatpush1.msra.mxu0 0.0
  %188 = vmatprep.subr.mxu0 0.0
  %189 = vmatpush1.msra.mxu0 0.0
  %190 = vmatprep.subr.mxu0 0.0
  %191 = vmatpush1.msra.mxu0 0.0
  %192 = vmatprep.subr.mxu0 0.0
  %193 = vmatpush1.msra.mxu0 0.0
  %194 = vmatprep.subr.mxu0 0.0
  %195 = vmatpush1.msra.mxu0 0.0
  %196 = vmatprep.subr.mxu0 0.0
  %197 = vmatpush1.msra.mxu0 0.0
  %198 = vmatprep.mubr.f32.mxu0 0.0
  %199 = vmatmul.mubr.f32.gmra.mrb[0].mxu0 %v132
  %v200 = vpop.f32.mrb[0].mxu0
  %v201 = vadd.f32 %v128, %v200
  %v202 = vpop.f32.mrb[0].mxu0
  %203 = vdwg.mxu0
  %v204 = vmax.f32 %v201, 0.0
  %v205 = vld [vmem:[%s5] sm:$0xff]
  %v206 = vld [vmem:[%s5 + $0x8] sm:$0xff]
  %v207 = vld [vmem:[%s5 + $0x10] sm:$0xff]
  %v208 = vld [vmem:[%s5 + $0x18] sm:$0xff]
  %v209 = vld [vmem:[#allocation2] sm:$0x1]
  %v211 = vlaneseq
  %v212 = vshrl.u32 %v211, 7
  %v213 = vsub.s32 0, %v212
  %v214 = vrot.slane %v209, %v213
  %v217 = vsel %vm40, %v204, 0
  %219 = vmatprep.subr.mxu0 0.0
  %220 = vmatpush1.msra.mxu0 %v205
  %221 = vmatprep.subr.mxu0 0.0
  %222 = vmatpush1.msra.mxu0 %v206
  %223 = vmatprep.subr.mxu0 0.0
  %224 = vmatpush1.msra.mxu0 %v207
  %225 = vmatprep.subr.mxu0 0.0
  %226 = vmatpush1.msra.mxu0 %v208
  %227 = vmatprep.subr.mxu0 0.0
  %228 = vmatpush1.msra.mxu0 0.0
  %229 = vmatprep.subr.mxu0 0.0
  %230 = vmatpush1.msra.mxu0 0.0
  %231 = vmatprep.subr.mxu0 0.0
  %232 = vmatpush1.msra.mxu0 0.0
  %233 = vmatprep.subr.mxu0 0.0
  %234 = vmatpush1.msra.mxu0 0.0
  %235 = vmatprep.subr.mxu0 0.0
  %236 = vmatpush1.msra.mxu0 0.0
  %237 = vmatprep.subr.mxu0 0.0
  %238 = vmatpush1.msra.mxu0 0.0
  %239 = vmatprep.subr.mxu0 0.0
  %240 = vmatpush1.msra.mxu0 0.0
  %241 = vmatprep.subr.mxu0 0.0
  %242 = vmatpush1.msra.mxu0 0.0
  %243 = vmatprep.subr.mxu0 0.0
  %244 = vmatpush1.msra.mxu0 0.0
  %245 = vmatprep.subr.mxu0 0.0
  %246 = vmatpush1.msra.mxu0 0.0
  %247 = vmatprep.subr.mxu0 0.0
  %248 = vmatpush1.msra.mxu0 0.0
  %249 = vmatprep.subr.mxu0 0.0
  %250 = vmatpush1.msra.mxu0 0.0
  %251 = vmatprep.subr.mxu0 0.0
  %252 = vmatpush1.msra.mxu0 0.0
  %253 = vmatprep.subr.mxu0 0.0
  %254 = vmatpush1.msra.mxu0 0.0
  %255 = vmatprep.subr.mxu0 0.0
  %256 = vmatpush1.msra.mxu0 0.0
  %257 = vmatprep.subr.mxu0 0.0
  %258 = vmatpush1.msra.mxu0 0.0
  %259 = vmatprep.subr.mxu0 0.0
  %260 = vmatpush1.msra.mxu0 0.0
  %261 = vmatprep.subr.mxu0 0.0
  %262 = vmatpush1.msra.mxu0 0.0
  %263 = vmatprep.subr.mxu0 0.0
  %264 = vmatpush1.msra.mxu0 0.0
  %265 = vmatprep.subr.mxu0 0.0
  %266 = vmatpush1.msra.mxu0 0.0
  %267 = vmatprep.subr.mxu0 0.0
  %268 = vmatpush1.msra.mxu0 0.0
  %269 = vmatprep.subr.mxu0 0.0
  %270 = vmatpush1.msra.mxu0 0.0
  %271 = vmatprep.subr.mxu0 0.0
  %272 = vmatpush1.msra.mxu0 0.0
  %273 = vmatprep.subr.mxu0 0.0
  %274 = vmatpush1.msra.mxu0 0.0
  %275 = vmatprep.subr.mxu0 0.0
  %276 = vmatpush1.msra.mxu0 0.0
  %277 = vmatprep.subr.mxu0 0.0
  %278 = vmatpush1.msra.mxu0 0.0
  %279 = vmatprep.subr.mxu0 0.0
  %280 = vmatpush1.msra.mxu0 0.0
  %281 = vmatprep.subr.mxu0 0.0
  %282 = vmatpush1.msra.mxu0 0.0
  %283 = vmatprep.mubr.f32.mxu0 0.0
  %284 = vmatmul.mubr.f32.gmra.mrb[0].mxu0 %v217
  %v285 = vpop.f32.mrb[0].mxu0
  %v286 = vadd.f32 %v214, %v285
  %v287 = vpop.f32.mrb[0].mxu0
  %288 = vdwg.mxu0
  %v289 = vsub.f32 0.0, %v286
  %v290 = vmul.f32 %v289, 1.442695
  %v291 = vpow.pop %v290
  %v292 = vadd.f32 %v291, 1.0
  %v293 = vrcp.pop %v292
  %vm294 = vcmask 7168
  %295 = vst.msk [vmem:[%s7] sm:$0xff] %vm294, %v293
  // Predicated region
  $region30: #{tpu_custom_call.1} parent=0 // pred_check
    _
  $region31: #{tpu_custom_call.1} parent=0 // pred_check_branch
    %297 = sbr.rel (0) target = $region33
  $region32: #{tpu_custom_call.1} parent=0 // pred_region
    _
  $region33: #{tpu_custom_call.1} parent=0 // pred_fallthru
    _
  // Predicated region
  $region34: #{tpu_custom_call.1} parent=0 // pred_check
    _
  $region35: #{tpu_custom_call.1} parent=0 // pred_check_branch
    %299 = sbr.rel (0) target = $region37
  $region36: #{tpu_custom_call.1} parent=0 // pred_region
    _
  $region37: #{tpu_custom_call.1} parent=0 // pred_fallthru
    _

</llo_original>
